<compile_context>
chip_gen: v5e
topology: v5e:2x2
jax: 0.10.0
libtpu: 0.0.40
codegen_flags: <defaults>
</compile_context>

<pallas_src>
import functools

import jax
import jax.numpy as jnp
from jax import lax
from jax.experimental import pallas as pl
from jax.experimental.pallas import tpu as pltpu


def _head_kernel(x_ref, wqkv_ref, o_ref, *, bb, T, H):
    # x_ref:    (bb*T, C)   rows of `bb` batch elements, flattened
    # wqkv_ref: (C, 3H)     fused [Wq | Wk | Wv]
    # o_ref:    (bb*T, H)
    x = x_ref[...]            # native dtype (bf16 stays bf16 for the MXU)
    wqkv = wqkv_ref[...]

    # Fused QKV projection over M = bb*T rows, one MXU stream, f32 accumulation.
    qkv = jnp.dot(x, wqkv, preferred_element_type=jnp.float32)   # (bb*T, 3H) f32
    qkv = qkv.reshape(bb, T, 3 * H)

    scale = jnp.float32(H) ** -0.5
    q = qkv[:, :, 0 * H:1 * H] * scale           # scale q (fewer elems than T*T)
    k = qkv[:, :, 1 * H:2 * H]
    v = qkv[:, :, 2 * H:3 * H]

    # Attention scores: contract H directly, batched over bb (no k transpose).
    wei = lax.dot_general(
        q, k,
        dimension_numbers=(((2,), (2,)), ((0,), (0,))),
        preferred_element_type=jnp.float32)                      # (bb, T, T)

    # Causal mask with a large finite negative sentinel.
    row = lax.broadcasted_iota(jnp.int32, (T, T), 0)
    col = lax.broadcasted_iota(jnp.int32, (T, T), 1)
    wei = jnp.where((row >= col)[None, :, :], wei, jnp.float32(-1e30))

    # Numerically-stable softmax in f32; reciprocal on the (otherwise idle) EUP.
    m = jnp.max(wei, axis=-1, keepdims=True)
    e = jnp.exp(wei - m)
    denom = jnp.sum(e, axis=-1, keepdims=True)
    p = e * pl.reciprocal(denom, approx=True)

    # dropout: identity (p = 0.0 / eval mode)
    # TODO(synk): stochastic dropout via pltpu.prng_random_bits when p > 0.

    # wei @ v in the input dtype (bf16 when x is bf16), f32 accumulation.
    out = lax.dot_general(
        p.astype(x.dtype), v.astype(x.dtype),
        dimension_numbers=(((2,), (1,)), ((0,), (0,))),
        preferred_element_type=jnp.float32)                      # (bb, T, H)

    o_ref[...] = out.reshape(bb * T, H).astype(o_ref.dtype)


def _pick_batch_block(B, T, target_rows=256):
    """Pack enough batch elements per grid step to fill MXU rows / amortize the
    ~0.35us per-step overhead, while keeping >=2 parallel steps for large B
    (v7x has 2 TensorCores). bb always divides B exactly (no partial blocks)."""
    bb = max(1, min(B, max(1, target_rows // max(T, 1))))
    while B % bb:
        bb -= 1
    return bb


def head_forward(x, w_key, w_query, w_value):
    """Single attention head forward.

    x:                  (B, T, C)
    w_key/query/value:  PyTorch nn.Linear weights, shape (head_size, C).
    returns:            (B, T, head_size)
    """
    B, T, C = x.shape
    H = w_key.shape[0]

    # Fuse the three projections into one (C, 3H) weight: [q | k | v].
    wqkv = jnp.concatenate([w_query.T, w_key.T, w_value.T], axis=1)

    bb = _pick_batch_block(B, T)
    grid = (B // bb,)

    x2d = x.reshape(B * T, C)
    kernel = functools.partial(_head_kernel, bb=bb, T=T, H=H)

    out2d = pl.pallas_call(
        kernel,
        out_shape=jax.ShapeDtypeStruct((B * T, H), x.dtype),
        grid_spec=pltpu.PrefetchScalarGridSpec(
            num_scalar_prefetch=0,
            grid=grid,
            in_specs=[
                pl.BlockSpec((bb * T, C), lambda i: (i, 0)),      # x rows
                pl.BlockSpec((C, 3 * H), lambda i: (0, 0)),       # fused Wqkv
            ],
            out_specs=pl.BlockSpec((bb * T, H), lambda i: (i, 0)),
        ),
        compiler_params=pltpu.CompilerParams(
            dimension_semantics=("parallel",),
        ),
    )(x2d, wqkv)

    return out2d.reshape(B, T, H)


def head_reference(x, w_key, w_query, w_value):
    """Pure-JAX reference matching the PyTorch module (dropout p=0)."""
    k = x @ w_key.T
    q = x @ w_query.T
    v = x @ w_value.T
    H = k.shape[-1]
    wei = (q @ jnp.swapaxes(k, -2, -1)) * (H ** -0.5)
    T = x.shape[1]
    mask = jnp.tril(jnp.ones((T, T), dtype=bool))
    wei = jnp.where(mask, wei, -jnp.inf)
    wei = jax.nn.softmax(wei, axis=-1)
    return wei @ v


if __name__ == "__main__":
    # Config: n_embd=32, block_size=8 (seq len), head_size=16, dropout=0.0
    B, T, C, H = 2, 8, 32, 16

    key = jax.random.PRNGKey(0)
    kx, kk, kq, kv = jax.random.split(key, 4)
    x = jax.random.normal(kx, (B, T, C), dtype=jnp.float32)
    # deterministic "Linear" weights, PyTorch layout (head_size, n_embd)
    w_key = jax.random.normal(kk, (H, C), dtype=jnp.float32) * (C ** -0.5)
    w_query = jax.random.normal(kq, (H, C), dtype=jnp.float32) * (C ** -0.5)
    w_value = jax.random.normal(kv, (H, C), dtype=jnp.float32) * (C ** -0.5)

    out = head_forward(x, w_key, w_query, w_value)
    out = jax.block_until_ready(out)

    ref = head_reference(x, w_key, w_query, w_value)
    assert out.shape == (B, T, H)
    # approx reciprocal (EUP vrcp) -> slightly looser tolerance than exact divide
    assert jnp.allclose(out, ref, atol=2e-2, rtol=2e-2), (
        f"max abs err {jnp.max(jnp.abs(out - ref))}"
    )
    print("KERNEL_OK")
</pallas_src>

<mosaic_0001>
module attributes {stable_mosaic.version = 11 : i64} {
  func.func @_head_kernel(%arg0: i32, %arg1: memref<16x32xf32, #tpu.memory_space<vmem>>, %arg2: memref<32x48xf32, #tpu.memory_space<vmem>>, %arg3: memref<16x16xf32, #tpu.memory_space<vmem>>) attributes {dimension_semantics = [#tpu.dimension_semantics<parallel>], iteration_bounds = array<i64: 1>, scalar_prefetch = 0 : i64, scratch_operands = 0 : i64, tpu.core_type = #tpu.core_type<tc>, window_params = [{transform_indices = @transform_0, window_bounds = array<i64: 16, 32>}, {pipeline_mode = #tpu.pipeline_mode<synchronous>, transform_indices = @transform_1, window_bounds = array<i64: 32, 48>}, {transform_indices = @transform_2, window_bounds = array<i64: 16, 16>}]} {
    %c0 = arith.constant 0 : index
    %c0_0 = arith.constant 0 : index
    %0 = vector.load %arg1[%c0, %c0_0] : memref<16x32xf32, #tpu.memory_space<vmem>>, vector<16x32xf32>
    %c0_1 = arith.constant 0 : index
    %c0_2 = arith.constant 0 : index
    %1 = vector.load %arg2[%c0_1, %c0_2] : memref<32x48xf32, #tpu.memory_space<vmem>>, vector<32x48xf32>
    %cst = arith.constant dense<0.000000e+00> : vector<16x48xf32>
    %2 = tpu.matmul %0, %1, %cst {dimension_numbers = #tpu.dot_dimension_numbers<[1], [0], [0], [1], [0, 0, 1, 1], [], []>} : vector<16x32xf32>, vector<32x48xf32>, vector<16x48xf32> -> vector<16x48xf32>
    %3 = vector.shape_cast %2 : vector<16x48xf32> to vector<2x8x48xf32>
    %cst_3 = arith.constant 1.600000e+01 : f32
    %cst_4 = arith.constant -5.000000e-01 : f32
    %4 = math.powf %cst_3, %cst_4 : f32
    %5 = vector.extract_strided_slice %3 {offsets = [0, 0, 0], sizes = [2, 8, 16], strides = [1, 1, 1]} : vector<2x8x48xf32> to vector<2x8x16xf32>
    %6 = vector.broadcast %4 : f32 to vector<2x8x16xf32>
    %7 = arith.mulf %5, %6 : vector<2x8x16xf32>
    %8 = vector.extract_strided_slice %3 {offsets = [0, 0, 16], sizes = [2, 8, 16], strides = [1, 1, 1]} : vector<2x8x48xf32> to vector<2x8x16xf32>
    %9 = vector.extract_strided_slice %3 {offsets = [0, 0, 32], sizes = [2, 8, 16], strides = [1, 1, 1]} : vector<2x8x48xf32> to vector<2x8x16xf32>
    %cst_5 = arith.constant dense<0.000000e+00> : vector<2x8x8xf32>
    %10 = tpu.matmul %7, %8, %cst_5 {dimension_numbers = #tpu.dot_dimension_numbers<[2], [2], [1], [1], [0, 0, 0, 1, 1, 1], [0], [0]>} : vector<2x8x16xf32>, vector<2x8x16xf32>, vector<2x8x8xf32> -> vector<2x8x8xf32>
    %11 = tpu.iota {dimensions = array<i32: 0>} : vector<8x8xi32>
    %12 = tpu.iota {dimensions = array<i32: 1>} : vector<8x8xi32>
    %13 = arith.cmpi sge, %11, %12 : vector<8x8xi32>
    %14 = vector.shape_cast %13 : vector<8x8xi1> to vector<1x8x8xi1>
    %cst_6 = arith.constant -1.000000e+30 : f32
    %15 = vector.shape_cast %14 : vector<1x8x8xi1> to vector<1x8x8xi1>
    %16 = vector.broadcast %15 : vector<1x8x8xi1> to vector<2x8x8xi1>
    %17 = vector.broadcast %cst_6 : f32 to vector<2x8x8xf32>
    %18 = arith.select %16, %10, %17 : vector<2x8x8xi1>, vector<2x8x8xf32>
    %cst_7 = arith.constant dense<0xFF800000> : vector<2x8xf32>
    %19 = vector.multi_reduction <maximumf>, %18, %cst_7 [2] : vector<2x8x8xf32> to vector<2x8xf32>
    %20 = vector.shape_cast %19 : vector<2x8xf32> to vector<2x8x1xf32>
    %21 = vector.broadcast %20 : vector<2x8x1xf32> to vector<2x8x8xf32>
    %22 = arith.subf %18, %21 : vector<2x8x8xf32>
    %23 = math.exp %22 : vector<2x8x8xf32>
    %cst_8 = arith.constant dense<0.000000e+00> : vector<2x8xf32>
    %24 = vector.multi_reduction <add>, %23, %cst_8 [2] : vector<2x8x8xf32> to vector<2x8xf32>
    %25 = vector.shape_cast %24 : vector<2x8xf32> to vector<2x8x1xf32>
    %26 = tpu.reciprocal %25 {approx = true} : vector<2x8x1xf32> -> vector<2x8x1xf32>
    %27 = vector.broadcast %26 : vector<2x8x1xf32> to vector<2x8x8xf32>
    %28 = arith.mulf %23, %27 : vector<2x8x8xf32>
    %cst_9 = arith.constant dense<0.000000e+00> : vector<2x8x16xf32>
    %29 = tpu.matmul %28, %9, %cst_9 {dimension_numbers = #tpu.dot_dimension_numbers<[2], [1], [1], [2], [0, 0, 0, 1, 1, 2], [0], [0]>} : vector<2x8x8xf32>, vector<2x8x16xf32>, vector<2x8x16xf32> -> vector<2x8x16xf32>
    %30 = vector.shape_cast %29 : vector<2x8x16xf32> to vector<16x16xf32>
    %c0_10 = arith.constant 0 : index
    %c0_11 = arith.constant 0 : index
    %31 = vector.load %arg3[%c0_10, %c0_11] : memref<16x16xf32, #tpu.memory_space<vmem>>, vector<16x16xf32>
    tpu.vector_store %arg3[%c0_10, %c0_11], %30 {strides = array<i32>} : memref<16x16xf32, #tpu.memory_space<vmem>>, vector<16x16xf32>,
    return
  }
  func.func @transform_0(%arg0: i32) -> (i32, i32) {
    %c0_i32 = arith.constant 0 : i32
    %c0_i32_0 = arith.constant 0 : i32
    return %arg0, %c0_i32 : i32, i32
  }
  func.func @transform_1(%arg0: i32) -> (i32, i32) {
    %c0_i32 = arith.constant 0 : i32
    %c0_i32_0 = arith.constant 0 : i32
    %c0_i32_1 = arith.constant 0 : i32
    return %c0_i32, %c0_i32_0 : i32, i32
  }
  func.func @transform_2(%arg0: i32) -> (i32, i32) {
    %c0_i32 = arith.constant 0 : i32
    %c0_i32_0 = arith.constant 0 : i32
    return %arg0, %c0_i32 : i32, i32
  }
}

</mosaic_0001>

<llo_original>
// kernel: tpu_custom_call.1
$region0: #{tpu_custom_call.1}
  #allocation0 [shape = 'u32[]', space=smem, size = 0x4, offset = 0x4, fixed_abs, tag = 'smem constant byte address 0x4 - core index']
  #allocation1 [shape = 'u32[72,128]{1,0:T(1,128)}', space=vmem, size = 0x9000, scoped, tag = 'internal scratch']
  %s0 = inlined_call_operand.hbm [shape: f32[16,32], index: 0, kind: input, shape index: {}]
  %s1 = inlined_call_operand.hbm [shape: f32[32,48], index: 1, kind: input, shape index: {}]
  %s2 = inlined_call_operand.hbm [shape: f32[16,16], index: 2, kind: output, shape index: {}]
  %s3 = sld [smem:[#allocation0]]
  $region26: #{tpu_custom_call.1} parent=0
    _
  %s5 = ssub.s32 1, %s3
  %s6 = scalar_select 0, %s5, %s3
  $region1: #{tpu_custom_call.1} parent=0
    #allocation2 [shape = 'u8[8192]{0}', space=vmem, size = 0x2000, scoped, tag = 'input window, operand 0, single buffered']
    #allocation3 [shape = 's32[1]{0}', space=sflag, size = 0x4, scoped, tag = 'scoped memory for tpu_custom_call.1']
    #allocation4 [shape = 's32[1]{0}', space=sflag, size = 0x4, scoped, tag = 'scoped memory for tpu_custom_call.1']
    #allocation5 [shape = 'u8[16384]{0}', space=vmem, size = 0x4000, scoped, tag = 'input window, operand 1, single buffered']
    #allocation6 [shape = 's32[1]{0}', space=sflag, size = 0x4, scoped, tag = 'scoped memory for tpu_custom_call.1']
    #allocation7 [shape = 'u8[8192]{0}', space=vmem, size = 0x2000, scoped, tag = 'output window, operand 0, single buffered']
    %7 = vsyncpa [#allocation3], 0
    %8 = vsyncpa [#allocation6], 0
    %9 = vsyncpa [#allocation4], 0
    // Predicated region
    $region2: #{tpu_custom_call.1} parent=1 // pred_check
      _
    $region3: #{tpu_custom_call.1} parent=1 // pred_check_branch
      %11 = sbr.rel (0) target = $region5
    $region4: #{tpu_custom_call.1} parent=1 // pred_region
      %13 = vsyncadd [#allocation3], 0
      %s14 = sshll.u32 %s0, 4
      %s15 = int_to_ptr.hbm [resolvable:$true] %s14
      %s16 = sshll.u32 [#allocation2], 4
      %s17 = int_to_ptr.vmem [resolvable:$true] %s16
      %22 = dma.hbm_to_vmem [thread:$0]  %s15, 256, %s17, [#allocation3], 128, 128, 8
    $region5: #{tpu_custom_call.1} parent=1 // pred_fallthru
      _
    // Predicated region
    $region6: #{tpu_custom_call.1} parent=1 // pred_check
      _
    $region7: #{tpu_custom_call.1} parent=1 // pred_check_branch
      %24 = sbr.rel (0) target = $region9
    $region8: #{tpu_custom_call.1} parent=1 // pred_region
      %26 = vsyncadd [#allocation6], 0
      %s27 = sshll.u32 %s1, 4
      %s28 = int_to_ptr.hbm [resolvable:$true] %s27
      %s29 = sshll.u32 [#allocation5], 4
      %s30 = int_to_ptr.vmem [resolvable:$true] %s29
      %35 = dma.hbm_to_vmem [thread:$0]  %s28, 512, %s30, [#allocation6], 128, 128, 8
    $region9: #{tpu_custom_call.1} parent=1 // pred_fallthru
      _
    // Predicated region
    $region10: #{tpu_custom_call.1} parent=1 // pred_check
      _
    $region11: #{tpu_custom_call.1} parent=1 // pred_check_branch
      %37 = sbr.rel (0) target = $region13
    $region12: #{tpu_custom_call.1} parent=1 // pred_region
      %39 = dma.done [#allocation3], 256
    $region13: #{tpu_custom_call.1} parent=1 // pred_fallthru
      _
    // Predicated region
    $region14: #{tpu_custom_call.1} parent=1 // pred_check
      _
    $region15: #{tpu_custom_call.1} parent=1 // pred_check_branch
      %41 = sbr.rel (0) target = $region17
    $region16: #{tpu_custom_call.1} parent=1 // pred_region
      %43 = dma.done [#allocation6], 512
    $region17: #{tpu_custom_call.1} parent=1 // pred_fallthru
      _
    %v44 = vld [vmem:[#allocation2] sm:$0xff]
    %v45 = vld [vmem:[#allocation2 + $0x8] sm:$0xff]
    %v46 = vld [vmem:[#allocation5] sm:$0xff]
    %v47 = vld [vmem:[#allocation5 + $0x8] sm:$0xff]
    %v48 = vld [vmem:[#allocation5 + $0x10] sm:$0xff]
    %v49 = vld [vmem:[#allocation5 + $0x18] sm:$0xff]
    %vm50 = vcmask 261120
    %v52 = vsel %vm50, %v44, 0
    %v55 = vsel %vm50, %v45, 0
    %57 = vmatpush.msra.mxu0 0.0
    %58 = vmatpush.msra.mxu0 0.0
    %59 = vmatpush.msra.mxu0 0.0
    %60 = vmatpush.msra.mxu0 0.0
    %61 = vmatpush.msra.mxu0 0.0
    %62 = vmatpush.msra.mxu0 0.0
    %63 = vmatpush.msra.mxu0 0.0
    %64 = vmatpush.msra.mxu0 0.0
    %65 = vmatpush.msra.mxu0 0.0
    %66 = vmatpush.msra.mxu0 0.0
    %67 = vmatpush.msra.mxu0 0.0
    %68 = vmatpush.msra.mxu0 0.0
    %69 = vmatpush.msra.mxu0 %v49
    %70 = vmatpush.msra.mxu0 %v48
    %71 = vmatpush.msra.mxu0 %v47
    %72 = vmatpush.msra.mxu0 %v46
    %73 = vmatmul.f32.gmra.mxu0 %v52
    %v74 = vpop.f32.mrf.mxu0
    %v75 = vadd.f32 0.0, %v74
    %76 = vmatmul.f32.gmra.mxu0 %v55
    %v77 = vpop.f32.mrf.mxu0
    %v78 = vadd.f32 0.0, %v77
    %79 = vdwg.mxu0
    %v80 = vmul.f32 %v75, 0.25
    %v81 = vmul.f32 %v78, 0.25
    %83 = vrot.lane.b32.xlu0 %v75, 112
    %v84 = vpop.permute.xlu0 %83
    %vm85 = vcmask 130048
    %v87 = vsel %vm85, %v80, 0
    %v89 = vsel %vm85, %v84, 0
    %91 = vmatpush.xpose.msra.mxu0 0.0
    %92 = vmatpush.xpose.msra.mxu0 0.0
    %93 = vmatpush.xpose.msra.mxu0 0.0
    %94 = vmatpush.xpose.msra.mxu0 0.0
    %95 = vmatpush.xpose.msra.mxu0 0.0
    %96 = vmatpush.xpose.msra.mxu0 0.0
    %97 = vmatpush.xpose.msra.mxu0 0.0
    %98 = vmatpush.xpose.msra.mxu0 0.0
    %99 = vmatpush.xpose.msra.mxu0 0.0
    %100 = vmatpush.xpose.msra.mxu0 0.0
    %101 = vmatpush.xpose.msra.mxu0 0.0
    %102 = vmatpush.xpose.msra.mxu0 0.0
    %103 = vmatpush.xpose.msra.mxu0 0.0
    %104 = vmatpush.xpose.msra.mxu0 0.0
    %105 = vmatpush.xpose.msra.mxu0 0.0
    %106 = vmatpush.xpose.msra.mxu0 %v89
    %107 = vmatmul.f32.gmra.mxu0 %v87
    %v108 = vpop.f32.mrf.mxu0
    %v109 = vadd.f32 0.0, %v108
    %110 = vdwg.mxu0
    %112 = vrot.lane.b32.xlu0 %v78, 112
    %v113 = vpop.permute.xlu0 %112
    %v115 = vsel %vm85, %v81, 0
    %v117 = vsel %vm85, %v113, 0
    %119 = vmatpush.xpose.msra.mxu0 0.0
    %120 = vmatpush.xpose.msra.mxu0 0.0
    %121 = vmatpush.xpose.msra.mxu0 0.0
    %122 = vmatpush.xpose.msra.mxu0 0.0
    %123 = vmatpush.xpose.msra.mxu0 0.0
    %124 = vmatpush.xpose.msra.mxu0 0.0
    %125 = vmatpush.xpose.msra.mxu0 0.0
    %126 = vmatpush.xpose.msra.mxu0 0.0
    %127 = vmatpush.xpose.msra.mxu0 0.0
    %128 = vmatpush.xpose.msra.mxu0 0.0
    %129 = vmatpush.xpose.msra.mxu0 0.0
    %130 = vmatpush.xpose.msra.mxu0 0.0
    %131 = vmatpush.xpose.msra.mxu0 0.0
    %132 = vmatpush.xpose.msra.mxu0 0.0
    %133 = vmatpush.xpose.msra.mxu0 0.0
    %134 = vmatpush.xpose.msra.mxu0 %v117
    %135 = vmatmul.f32.gmra.mxu0 %v115
    %v136 = vpop.f32.mrf.mxu0
    %v137 = vadd.f32 0.0, %v136
    %138 = vdwg.mxu0
    %v139 = vlaneseq
    %v140 = vshrl.u32 %v139, 7
    %v141 = vlaneseq
    %v142 = vand.u32 %v141, 127
    %vm143 = vcmp.ge.s32.totalorder %v140, %v142
    %v144 = vsel %vm143, 1, 0
    %vm145 = vcmp.eq.s32.totalorder %v144, 1
    %v146 = vsel %vm145, %v109, -1e+30
    %v147 = vsel %vm145, %v137, -1e+30
    %vm148 = vcmask 64512
    %v149 = vsel %vm148, %v146, -inf
    %150 = vmax.xlane.f32.xlu0 %v149
    %v151 = vpop.xlane.xlu0 %150
    %v152 = vsel %vm148, %v147, -inf
    %153 = vmax.xlane.f32.xlu0 %v152
    %v154 = vpop.xlane.xlu0 %153
    %v155 = vsub.f32 %v146, %v151
    %v156 = vsub.f32 %v147, %v154
    %v157 = vmul.f32 %v155, 1.442695
    %v158 = vpow.pop %v157
    %v159 = vmul.f32 %v156, 1.442695
    %v160 = vpow.pop %v159
    %v161 = vsel %vm148, %v158, 0.0
    %162 = vadd.xlane.f32.xlu0 %v161
    %v163 = vpop.xlane.xlu0 %162
    %v164 = vsel %vm148, %v160, 0.0
    %165 = vadd.xlane.f32.xlu0 %v164
    %v166 = vpop.xlane.xlu0 %165
    %v167 = vrcp.pop %v163
    %v168 = vrcp.pop %v166
    %v169 = vmul.f32 %v158, %v167
    %v170 = vmul.f32 %v160, %v168
    %171 = vrot.lane.b32.xlu0 %v75, 96
    %v172 = vpop.permute.xlu0 %171
    %v175 = vsel %vm148, %v169, 0
    %177 = vmatpush.msra.mxu0 0.0
    %178 = vmatpush.msra.mxu0 0.0
    %179 = vmatpush.msra.mxu0 0.0
    %180 = vmatpush.msra.mxu0 0.0
    %181 = vmatpush.msra.mxu0 0.0
    %182 = vmatpush.msra.mxu0 0.0
    %183 = vmatpush.msra.mxu0 0.0
    %184 = vmatpush.msra.mxu0 0.0
    %185 = vmatpush.msra.mxu0 0.0
    %186 = vmatpush.msra.mxu0 0.0
    %187 = vmatpush.msra.mxu0 0.0
    %188 = vmatpush.msra.mxu0 0.0
    %189 = vmatpush.msra.mxu0 0.0
    %190 = vmatpush.msra.mxu0 0.0
    %191 = vmatpush.msra.mxu0 0.0
    %192 = vmatpush.msra.mxu0 %v172
    %193 = vmatmul.f32.gmra.mxu0 %v175
    %v194 = vpop.f32.mrf.mxu0
    %v195 = vadd.f32 0.0, %v194
    %196 = vdwg.mxu0
    %197 = vrot.lane.b32.xlu0 %v78, 96
    %v198 = vpop.permute.xlu0 %197
    %v201 = vsel %vm148, %v170, 0
    %203 = vmatpush.msra.mxu0 0.0
    %204 = vmatpush.msra.mxu0 0.0
    %205 = vmatpush.msra.mxu0 0.0
    %206 = vmatpush.msra.mxu0 0.0
    %207 = vmatpush.msra.mxu0 0.0
    %208 = vmatpush.msra.mxu0 0.0
    %209 = vmatpush.msra.mxu0 0.0
    %210 = vmatpush.msra.mxu0 0.0
    %211 = vmatpush.msra.mxu0 0.0
    %212 = vmatpush.msra.mxu0 0.0
    %213 = vmatpush.msra.mxu0 0.0
    %214 = vmatpush.msra.mxu0 0.0
    %215 = vmatpush.msra.mxu0 0.0
    %216 = vmatpush.msra.mxu0 0.0
    %217 = vmatpush.msra.mxu0 0.0
    %218 = vmatpush.msra.mxu0 %v198
    %219 = vmatmul.f32.gmra.mxu0 %v201
    %v220 = vpop.f32.mrf.mxu0
    %v221 = vadd.f32 0.0, %v220
    %222 = vdwg.mxu0
    %223 = vst.msk [vmem:[#allocation7] sm:$0xff] %vm85, %v195
    %224 = vst.msk [vmem:[#allocation7 + $0x8] sm:$0xff] %vm85, %v221
    // Predicated region
    $region18: #{tpu_custom_call.1} parent=1 // pred_check
      _
    $region19: #{tpu_custom_call.1} parent=1 // pred_check_branch
      %226 = sbr.rel (0) target = $region21
    $region20: #{tpu_custom_call.1} parent=1 // pred_region
      %228 = vsyncadd [#allocation4], 0
      %s229 = sshll.u32 [#allocation7], 4
      %s230 = int_to_ptr.vmem [resolvable:$true] %s229
      %s231 = sshll.u32 %s2, 4
      %s232 = int_to_ptr.hbm [resolvable:$true] %s231
      %237 = dma.vmem_to_hbm [thread:$0]  %s230, 256, %s232, [#allocation4], 128, 128, 8
    $region21: #{tpu_custom_call.1} parent=1 // pred_fallthru
      _
    // Predicated region
    $region22: #{tpu_custom_call.1} parent=1 // pred_check
      _
    $region23: #{tpu_custom_call.1} parent=1 // pred_check_branch
      %239 = sbr.rel (0) target = $region25
    $region24: #{tpu_custom_call.1} parent=1 // pred_region
      %241 = dma.done [#allocation4], 256
    $region25: #{tpu_custom_call.1} parent=1 // pred_fallthru
      _
    %242 = vsyncpa [#allocation3], 1
    %243 = vsyncpa [#allocation6], 1
    %244 = vsyncpa [#allocation4], 1

</llo_original>
